<compile_context>
chip_gen: v7x
topology: tpu7x:2x2x1
jax: 0.10.0
libtpu: 0.0.40
codegen_flags: <defaults>
</compile_context>

<pallas_src>
from functools import partial

import jax
import jax.numpy as jnp
from jax.experimental import pallas as pl
from jax.experimental.pallas import tpu as pltpu

# ----------------------------------------------------------------------------
# Config (mirrors the PyTorch module __init__ arguments)
# ----------------------------------------------------------------------------
LATENT = 32                      # latent_space_size
HIDDEN_DIMS = [64, 128]          # hidden_dimensions (decoder walks reversed())
MEAN_DIM = 24                    # pose_distribution.mean_dimension   (synthetic)
LOGVAR_DIM = 24                  # pose_distribution.logvar_dimension (synthetic)
HEAD_PAD = 128                   # lane-dense padded width for every layer output
LEAKY_SLOPE = 0.01               # nn.LeakyReLU default
BN_EPS = 1e-5                    # nn.BatchNorm1d default eps
BATCH = 16                       # multiple of 8 (f32 sublane)


# ----------------------------------------------------------------------------
# Kernel: chain of [dot + bias (+ leaky-relu)] reading static slab slices
# ----------------------------------------------------------------------------
def make_decoder_kernel(row_spans, num_hidden, slope):
    """row_spans[i] = (r0, r1) row range of matmul i's weight inside the slab.
    The first `num_hidden` matmuls are followed by LeakyReLU; the last one is
    the fused mean/logvar head."""

    def kernel(x_ref, w_ref, b_ref, out_ref):
        h = x_ref[...]                                         # [B, LATENT]
        for i, (r0, r1) in enumerate(row_spans):
            # Static, 8-aligned row slice of the weight slab: no relayout copy.
            h = jnp.dot(h, w_ref[r0:r1, :],
                        preferred_element_type=jnp.float32)
            h = h + b_ref[i:i + 1, :]                          # [1,128] broadcast
            if i < num_hidden:
                h = jnp.maximum(h, slope * h)                  # LeakyReLU
        out_ref[...] = h.astype(out_ref.dtype)                 # [B, 128] lane-dense

    return kernel


# ----------------------------------------------------------------------------
# One-time parameter packing (OFF the per-call hot path)
# ----------------------------------------------------------------------------
def prepare_params(params):
    """Fold inference BatchNorm1d into each Linear, fuse the two heads, zero-pad
    every output to a lane-dense 128 width, and pack everything into:
      w_slab [sum(in_pad), 128]   (here [288, 128])
      b_slab [8, 128]
    Returns (w_slab, b_slab, row_spans)."""
    folded_w, folded_b = [], []
    for (w, b, g, be, rm, rv) in params["layers"]:
        s = g * jax.lax.rsqrt(rv + BN_EPS)                     # [1, out]
        folded_w.append(w * s)                                 # [in, out]
        folded_b.append((b - rm) * s + be)                     # [1, out]

    # Fused mean/logvar head: [hidden0, MEAN+LOGVAR]
    w_head = jnp.concatenate([params["wm"], params["wl"]], axis=1)
    b_head = jnp.concatenate([params["bm"], params["bl"]], axis=1)
    folded_w.append(w_head)
    folded_b.append(b_head)

    blocks, biases, row_spans = [], [], []
    r = 0
    for i, (w, b) in enumerate(zip(folded_w, folded_b)):
        in_dim, out_dim = w.shape
        # Matmul 0 consumes the raw latent (width 32, 8-aligned); every later
        # matmul consumes the previous padded [B, 128] activation.
        in_pad = in_dim if i == 0 else HEAD_PAD
        assert in_dim <= in_pad and out_dim <= HEAD_PAD and in_pad % 8 == 0
        wp = jnp.zeros((in_pad, HEAD_PAD), jnp.float32).at[:in_dim, :out_dim].set(w)
        bp = jnp.zeros((1, HEAD_PAD), jnp.float32).at[:, :out_dim].set(b)
        blocks.append(wp)
        biases.append(bp)
        row_spans.append((r, r + in_pad))
        r += in_pad

    w_slab = jnp.concatenate(blocks, axis=0)                   # [288, 128]
    pad_rows = 8 - len(biases)
    b_slab = jnp.concatenate(
        biases + [jnp.zeros((pad_rows, HEAD_PAD), jnp.float32)], axis=0)  # [8, 128]
    return w_slab, b_slab, tuple(row_spans)


# ----------------------------------------------------------------------------
# Hot-path forward: one pallas_call (3 input DMAs) + two output slices
# ----------------------------------------------------------------------------
@partial(jax.jit, static_argnums=(3,))
def pose_vae_decoder(x, w_slab, b_slab, row_spans):
    """x: [B, LATENT] f32. Returns (mean [B, MEAN_DIM], logvar [B, LOGVAR_DIM])."""
    B = x.shape[0]
    kernel = make_decoder_kernel(row_spans, num_hidden=len(HIDDEN_DIMS),
                                 slope=LEAKY_SLOPE)

    out = pl.pallas_call(
        kernel,
        out_shape=jax.ShapeDtypeStruct((B, HEAD_PAD), jnp.float32),
        grid_spec=pltpu.PrefetchScalarGridSpec(
            num_scalar_prefetch=0,
            grid=(1,),                                 # whole batch in one step
            in_specs=[
                pl.BlockSpec(x.shape, lambda i: (0, 0)),
                pl.BlockSpec(w_slab.shape, lambda i: (0, 0)),
                pl.BlockSpec(b_slab.shape, lambda i: (0, 0)),
            ],
            out_specs=pl.BlockSpec((B, HEAD_PAD), lambda i: (0, 0)),
        ),
        compiler_params=pltpu.CompilerParams(dimension_semantics=("arbitrary",)),
    )(x, w_slab, b_slab)

    mean = out[:, :MEAN_DIM]
    logvar = out[:, MEAN_DIM:MEAN_DIM + LOGVAR_DIM]
    return mean, logvar


# ----------------------------------------------------------------------------
# Deterministic parameter construction (synthetic, not a checkpoint)
# ----------------------------------------------------------------------------
def init_params(key):
    keys = jax.random.split(key, 64)
    ki = iter(range(64))

    def nxt():
        return keys[next(ki)]

    layers = []
    prev = LATENT
    # make_modules walks reversed(hidden_dimensions)
    for dim in reversed(HIDDEN_DIMS):
        w = 0.1 * jax.random.normal(nxt(), (prev, dim), jnp.float32)   # [in, out] (=W^T)
        b = 0.01 * jax.random.normal(nxt(), (1, dim), jnp.float32)
        gamma = 1.0 + 0.1 * jax.random.normal(nxt(), (1, dim), jnp.float32)
        beta = 0.05 * jax.random.normal(nxt(), (1, dim), jnp.float32)
        rmean = 0.1 * jax.random.normal(nxt(), (1, dim), jnp.float32)
        rvar = 1.0 + 0.1 * jnp.abs(jax.random.normal(nxt(), (1, dim), jnp.float32))
        layers.append((w, b, gamma, beta, rmean, rvar))
        prev = dim

    # heads take hidden_dimensions[0] features (= last decoder output dim)
    assert prev == HIDDEN_DIMS[0]
    wm = 0.1 * jax.random.normal(nxt(), (prev, MEAN_DIM), jnp.float32)
    bm_ = 0.01 * jax.random.normal(nxt(), (1, MEAN_DIM), jnp.float32)
    wl = 0.1 * jax.random.normal(nxt(), (prev, LOGVAR_DIM), jnp.float32)
    bl = 0.01 * jax.random.normal(nxt(), (1, LOGVAR_DIM), jnp.float32)

    return {"layers": layers, "wm": wm, "bm": bm_, "wl": wl, "bl": bl}


# Plain-JAX reference (mirrors the PyTorch forward, eval-mode batchnorm, un-folded)
def reference_forward(x, params):
    h = x
    for (w, b, g, be, rm, rv) in params["layers"]:
        h = h @ w + b
        h = (h - rm) / jnp.sqrt(rv + BN_EPS) * g + be
        h = jnp.where(h > 0, h, LEAKY_SLOPE * h)
    mean = h @ params["wm"] + params["bm"]
    logvar = h @ params["wl"] + params["bl"]
    return mean, logvar


# ----------------------------------------------------------------------------
if __name__ == "__main__":
    key = jax.random.PRNGKey(0)
    k_x, k_p = jax.random.split(key)
    x = jax.random.normal(k_x, (BATCH, LATENT), jnp.float32)
    params = init_params(k_p)

    # One-time packing (BN fold + head fusion + lane padding + slab concat).
    w_slab, b_slab, row_spans = prepare_params(params)
    w_slab, b_slab = jax.block_until_ready((w_slab, b_slab))

    mean, logvar = pose_vae_decoder(x, w_slab, b_slab, row_spans)
    jax.block_until_ready((mean, logvar))

    ref_mean, ref_logvar = reference_forward(x, params)
    assert mean.shape == (BATCH, MEAN_DIM) and logvar.shape == (BATCH, LOGVAR_DIM)
    assert jnp.allclose(mean, ref_mean, atol=1e-4, rtol=1e-4)
    assert jnp.allclose(logvar, ref_logvar, atol=1e-4, rtol=1e-4)

    print("KERNEL_OK")
</pallas_src>

<mosaic_0001>
module attributes {stable_mosaic.version = 11 : i64} {
  func.func @kernel(%arg0: i32, %arg1: memref<16x32xf32, #tpu.memory_space<vmem>>, %arg2: memref<288x128xf32, #tpu.memory_space<vmem>>, %arg3: memref<8x128xf32, #tpu.memory_space<vmem>>, %arg4: memref<16x128xf32, #tpu.memory_space<vmem>>) attributes {dimension_semantics = [#tpu.dimension_semantics<arbitrary>], iteration_bounds = array<i64: 1>, scalar_prefetch = 0 : i64, scratch_operands = 0 : i64, tpu.core_type = #tpu.core_type<tc>, window_params = [{pipeline_mode = #tpu.pipeline_mode<synchronous>, transform_indices = @transform_0, window_bounds = array<i64: 16, 32>}, {pipeline_mode = #tpu.pipeline_mode<synchronous>, transform_indices = @transform_1, window_bounds = array<i64: 288, 128>}, {pipeline_mode = #tpu.pipeline_mode<synchronous>, transform_indices = @transform_2, window_bounds = array<i64: 8, 128>}, {pipeline_mode = #tpu.pipeline_mode<synchronous>, transform_indices = @transform_3, window_bounds = array<i64: 16, 128>}]} {
    %c0 = arith.constant 0 : index
    %c0_0 = arith.constant 0 : index
    %0 = vector.load %arg1[%c0, %c0_0] : memref<16x32xf32, #tpu.memory_space<vmem>>, vector<16x32xf32>
    %c0_1 = arith.constant 0 : index
    %c0_2 = arith.constant 0 : index
    %1 = vector.load %arg2[%c0_1, %c0_2] : memref<288x128xf32, #tpu.memory_space<vmem>>, vector<32x128xf32>
    %cst = arith.constant dense<0.000000e+00> : vector<16x128xf32>
    %2 = tpu.matmul %0, %1, %cst {dimension_numbers = #tpu.dot_dimension_numbers<[1], [0], [0], [1], [0, 0, 1, 1], [], []>} : vector<16x32xf32>, vector<32x128xf32>, vector<16x128xf32> -> vector<16x128xf32>
    %c0_3 = arith.constant 0 : index
    %c0_4 = arith.constant 0 : index
    %3 = vector.load %arg3[%c0_3, %c0_4] : memref<8x128xf32, #tpu.memory_space<vmem>>, vector<1x128xf32>
    %4 = vector.broadcast %3 : vector<1x128xf32> to vector<16x128xf32>
    %5 = arith.addf %2, %4 : vector<16x128xf32>
    %cst_5 = arith.constant 0.00999999977 : f32
    %6 = vector.broadcast %cst_5 : f32 to vector<16x128xf32>
    %7 = arith.mulf %6, %5 : vector<16x128xf32>
    %8 = arith.maximumf %5, %7 : vector<16x128xf32>
    %c32 = arith.constant 32 : index
    %c0_6 = arith.constant 0 : index
    %9 = vector.load %arg2[%c32, %c0_6] : memref<288x128xf32, #tpu.memory_space<vmem>>, vector<128x128xf32>
    %cst_7 = arith.constant dense<0.000000e+00> : vector<16x128xf32>
    %10 = tpu.matmul %8, %9, %cst_7 {dimension_numbers = #tpu.dot_dimension_numbers<[1], [0], [0], [1], [0, 0, 1, 1], [], []>} : vector<16x128xf32>, vector<128x128xf32>, vector<16x128xf32> -> vector<16x128xf32>
    %c1 = arith.constant 1 : index
    %c0_8 = arith.constant 0 : index
    %11 = vector.load %arg3[%c1, %c0_8] : memref<8x128xf32, #tpu.memory_space<vmem>>, vector<1x128xf32>
    %12 = vector.broadcast %11 : vector<1x128xf32> to vector<16x128xf32>
    %13 = arith.addf %10, %12 : vector<16x128xf32>
    %cst_9 = arith.constant 0.00999999977 : f32
    %14 = vector.broadcast %cst_9 : f32 to vector<16x128xf32>
    %15 = arith.mulf %14, %13 : vector<16x128xf32>
    %16 = arith.maximumf %13, %15 : vector<16x128xf32>
    %c160 = arith.constant 160 : index
    %c0_10 = arith.constant 0 : index
    %17 = vector.load %arg2[%c160, %c0_10] : memref<288x128xf32, #tpu.memory_space<vmem>>, vector<128x128xf32>
    %cst_11 = arith.constant dense<0.000000e+00> : vector<16x128xf32>
    %18 = tpu.matmul %16, %17, %cst_11 {dimension_numbers = #tpu.dot_dimension_numbers<[1], [0], [0], [1], [0, 0, 1, 1], [], []>} : vector<16x128xf32>, vector<128x128xf32>, vector<16x128xf32> -> vector<16x128xf32>
    %c2 = arith.constant 2 : index
    %c0_12 = arith.constant 0 : index
    %19 = vector.load %arg3[%c2, %c0_12] : memref<8x128xf32, #tpu.memory_space<vmem>>, vector<1x128xf32>
    %20 = vector.broadcast %19 : vector<1x128xf32> to vector<16x128xf32>
    %21 = arith.addf %18, %20 : vector<16x128xf32>
    %c0_13 = arith.constant 0 : index
    %c0_14 = arith.constant 0 : index
    %22 = vector.load %arg4[%c0_13, %c0_14] : memref<16x128xf32, #tpu.memory_space<vmem>>, vector<16x128xf32>
    tpu.vector_store %arg4[%c0_13, %c0_14], %21 {strides = array<i32>} : memref<16x128xf32, #tpu.memory_space<vmem>>, vector<16x128xf32>,
    return
  }
  func.func @transform_0(%arg0: i32) -> (i32, i32) {
    %c0_i32 = arith.constant 0 : i32
    %c0_i32_0 = arith.constant 0 : i32
    %c0_i32_1 = arith.constant 0 : i32
    return %c0_i32, %c0_i32_0 : i32, i32
  }
  func.func @transform_1(%arg0: i32) -> (i32, i32) {
    %c0_i32 = arith.constant 0 : i32
    %c0_i32_0 = arith.constant 0 : i32
    %c0_i32_1 = arith.constant 0 : i32
    return %c0_i32, %c0_i32_0 : i32, i32
  }
  func.func @transform_2(%arg0: i32) -> (i32, i32) {
    %c0_i32 = arith.constant 0 : i32
    %c0_i32_0 = arith.constant 0 : i32
    %c0_i32_1 = arith.constant 0 : i32
    return %c0_i32, %c0_i32_0 : i32, i32
  }
  func.func @transform_3(%arg0: i32) -> (i32, i32) {
    %c0_i32 = arith.constant 0 : i32
    %c0_i32_0 = arith.constant 0 : i32
    %c0_i32_1 = arith.constant 0 : i32
    return %c0_i32, %c0_i32_0 : i32, i32
  }
}

</mosaic_0001>

<llo_original>
// kernel: pose_vae_decoder.1
$region0: #{pose_vae_decoder.1}
  #allocation0 [shape = 'u32[]', space=smem, size = 0x4, offset = 0x4, fixed_abs, tag = 'smem constant byte address 0x4 - core index']
  #allocation1 [shape = 'u32[144,128]{1,0:T(1,128)}', space=vmem, size = 0x12000, scoped, tag = 'internal scratch']
  %s0 = inlined_call_operand.hbm [shape: f32[16,32], index: 0, kind: input, shape index: {}]
  %s1 = inlined_call_operand.hbm [shape: f32[288,128], index: 1, kind: input, shape index: {}]
  %s2 = inlined_call_operand.hbm [shape: f32[8,128], index: 2, kind: input, shape index: {}]
  %s3 = inlined_call_operand.vmem [shape: f32[16,128], index: 3, kind: output, shape index: {}]
  %s4 = sld [smem:[#allocation0]]
  $region34: #{pose_vae_decoder.1} parent=0
    _
  %s6 = ssub.s32 1, %s4
  %s7 = scalar_select 0, %s6, %s4
  $region1: #{pose_vae_decoder.1} parent=0
    #allocation2 [shape = 'u8[8192]{0}', space=vmem, size = 0x2000, scoped, tag = 'input window, operand 0, single buffered']
    #allocation3 [shape = 's32[1]{0}', space=sflag, size = 0x4, scoped, tag = 'scoped memory for pose_vae_decoder.1']
    #allocation4 [shape = 'u8[147456]{0}', space=vmem, size = 0x24000, scoped, tag = 'input window, operand 1, single buffered']
    #allocation5 [shape = 's32[1]{0}', space=sflag, size = 0x4, scoped, tag = 'scoped memory for pose_vae_decoder.1']
    #allocation6 [shape = 'u8[4096]{0}', space=vmem, size = 0x1000, scoped, tag = 'input window, operand 2, single buffered']
    %8 = vsyncpa [#allocation3], 0
    %9 = vsyncpa [#allocation5], 0
    // Predicated region
    $region2: #{pose_vae_decoder.1} parent=1 // pred_check
      _
    $region3: #{pose_vae_decoder.1} parent=1 // pred_check_branch
      %11 = sbr.rel (0) target = $region5
    $region4: #{pose_vae_decoder.1} parent=1 // pred_region
      %s13 = ssub.s32 256, 256
      %14 = vsyncadd [#allocation3], %s13
      %s15 = sshll.u32 [#allocation2], 4
      %s16 = int_to_ptr.vmem [resolvable:$true] %s15
      %21 = dma.hbm_to_vmem [thread:$0]  %s0, 256, %s16, [#allocation3], 128, 128, 8
    $region5: #{pose_vae_decoder.1} parent=1 // pred_fallthru
      _
    // Predicated region
    $region6: #{pose_vae_decoder.1} parent=1 // pred_check
      _
    $region7: #{pose_vae_decoder.1} parent=1 // pred_check_branch
      %23 = sbr.rel (0) target = $region9
    $region8: #{pose_vae_decoder.1} parent=1 // pred_region
      %s25 = ssub.s32 4608, 4608
      %26 = vsyncadd [#allocation5], %s25
      %s27 = sshll.u32 [#allocation4], 4
      %s28 = int_to_ptr.vmem [resolvable:$true] %s27
      %33 = dma.hbm_to_vmem [thread:$0]  %s1, 4608, %s28, [#allocation5], 128, 128, 8
    $region9: #{pose_vae_decoder.1} parent=1 // pred_fallthru
      _
    // Predicated region
    $region10: #{pose_vae_decoder.1} parent=1 // pred_check
      _
    $region11: #{pose_vae_decoder.1} parent=1 // pred_check_branch
      %35 = sbr.rel (0) target = $region13
    $region12: #{pose_vae_decoder.1} parent=1 // pred_region
      %s37 = ssub.s32 128, 128
      %38 = vsyncadd [#allocation5], %s37
      %s40 = sshll.u32 [#allocation6], 4
      %s41 = int_to_ptr.vmem [resolvable:$true] %s40
      %43 = dma.hbm_to_vmem [thread:$0]  %s2, 128, %s41, [#allocation5]
    $region13: #{pose_vae_decoder.1} parent=1 // pred_fallthru
      _
    // Predicated region
    $region14: #{pose_vae_decoder.1} parent=1 // pred_check
      _
    $region15: #{pose_vae_decoder.1} parent=1 // pred_check_branch
      %45 = sbr.rel (0) target = $region17
    $region16: #{pose_vae_decoder.1} parent=1 // pred_region
      %46 = dma.done [#allocation3], 256
    $region17: #{pose_vae_decoder.1} parent=1 // pred_fallthru
      _
    // Predicated region
    $region18: #{pose_vae_decoder.1} parent=1 // pred_check
      _
    $region19: #{pose_vae_decoder.1} parent=1 // pred_check_branch
      %48 = sbr.rel (0) target = $region21
    $region20: #{pose_vae_decoder.1} parent=1 // pred_region
      %49 = dma.done [#allocation5], 4608
    $region21: #{pose_vae_decoder.1} parent=1 // pred_fallthru
      _
    // Predicated region
    $region22: #{pose_vae_decoder.1} parent=1 // pred_check
      _
    $region23: #{pose_vae_decoder.1} parent=1 // pred_check_branch
      %51 = sbr.rel (0) target = $region25
    $region24: #{pose_vae_decoder.1} parent=1 // pred_region
      %52 = dma.done [#allocation5], 128
    $region25: #{pose_vae_decoder.1} parent=1 // pred_fallthru
      _
    %v53 = vld [vmem:[#allocation2] sm:$0xff]
    %v54 = vld [vmem:[#allocation2 + $0x8] sm:$0xff]
    %v55 = vld [vmem:[#allocation4] sm:$0xff]
    %v56 = vld [vmem:[#allocation4 + $0x8] sm:$0xff]
    %v57 = vld [vmem:[#allocation4 + $0x10] sm:$0xff]
    %v58 = vld [vmem:[#allocation4 + $0x18] sm:$0xff]
    %v59 = vld [vmem:[#allocation6] sm:$0x1]
    %v60 = vlaneseq
    %v61 = vshrl.u32 %v60, 7
    %v62 = vsub.s32 0, %v61
    %v63 = vrot.slane %v59, %v62
    %vm64 = vcmask 261120
    %v66 = vsel %vm64, %v53, 0
    %v69 = vsel %vm64, %v54, 0
    %71 = vmatprep.subr.mxu0 0.0
    %72 = vmatpush1.msra.mxu0 %v55
    %73 = vmatprep.subr.mxu0 0.0
    %74 = vmatpush1.msra.mxu0 %v56
    %75 = vmatprep.subr.mxu0 0.0
    %76 = vmatpush1.msra.mxu0 %v57
    %77 = vmatprep.subr.mxu0 0.0
    %78 = vmatpush1.msra.mxu0 %v58
    %79 = vmatprep.subr.mxu0 0.0
    %80 = vmatpush1.msra.mxu0 0.0
    %81 = vmatprep.subr.mxu0 0.0
    %82 = vmatpush1.msra.mxu0 0.0
    %83 = vmatprep.subr.mxu0 0.0
    %84 = vmatpush1.msra.mxu0 0.0
    %85 = vmatprep.subr.mxu0 0.0
    %86 = vmatpush1.msra.mxu0 0.0
    %87 = vmatprep.subr.mxu0 0.0
    %88 = vmatpush1.msra.mxu0 0.0
    %89 = vmatprep.subr.mxu0 0.0
    %90 = vmatpush1.msra.mxu0 0.0
    %91 = vmatprep.subr.mxu0 0.0
    %92 = vmatpush1.msra.mxu0 0.0
    %93 = vmatprep.subr.mxu0 0.0
    %94 = vmatpush1.msra.mxu0 0.0
    %95 = vmatprep.subr.mxu0 0.0
    %96 = vmatpush1.msra.mxu0 0.0
    %97 = vmatprep.subr.mxu0 0.0
    %98 = vmatpush1.msra.mxu0 0.0
    %99 = vmatprep.subr.mxu0 0.0
    %100 = vmatpush1.msra.mxu0 0.0
    %101 = vmatprep.subr.mxu0 0.0
    %102 = vmatpush1.msra.mxu0 0.0
    %103 = vmatprep.subr.mxu0 0.0
    %104 = vmatpush1.msra.mxu0 0.0
    %105 = vmatprep.subr.mxu0 0.0
    %106 = vmatpush1.msra.mxu0 0.0
    %107 = vmatprep.subr.mxu0 0.0
    %108 = vmatpush1.msra.mxu0 0.0
    %109 = vmatprep.subr.mxu0 0.0
    %110 = vmatpush1.msra.mxu0 0.0
    %111 = vmatprep.subr.mxu0 0.0
    %112 = vmatpush1.msra.mxu0 0.0
    %113 = vmatprep.subr.mxu0 0.0
    %114 = vmatpush1.msra.mxu0 0.0
    %115 = vmatprep.subr.mxu0 0.0
    %116 = vmatpush1.msra.mxu0 0.0
    %117 = vmatprep.subr.mxu0 0.0
    %118 = vmatpush1.msra.mxu0 0.0
    %119 = vmatprep.subr.mxu0 0.0
    %120 = vmatpush1.msra.mxu0 0.0
    %121 = vmatprep.subr.mxu0 0.0
    %122 = vmatpush1.msra.mxu0 0.0
    %123 = vmatprep.subr.mxu0 0.0
    %124 = vmatpush1.msra.mxu0 0.0
    %125 = vmatprep.subr.mxu0 0.0
    %126 = vmatpush1.msra.mxu0 0.0
    %127 = vmatprep.subr.mxu0 0.0
    %128 = vmatpush1.msra.mxu0 0.0
    %129 = vmatprep.subr.mxu0 0.0
    %130 = vmatpush1.msra.mxu0 0.0
    %131 = vmatprep.subr.mxu0 0.0
    %132 = vmatpush1.msra.mxu0 0.0
    %133 = vmatprep.subr.mxu0 0.0
    %134 = vmatpush1.msra.mxu0 0.0
    %135 = vmatprep.mubr.f32.mxu0 0.0
    %136 = vmatmul.mubr.f32.gmra.mrb[0].mxu0 %v66
    %v137 = vpop.f32.mrb[0].mxu0
    %v138 = vadd.f32 %v63, %v137
    %v139 = vpop.f32.mrb[0].mxu0
    %140 = vmatprep.mubr.f32.mxu0 0.0
    %141 = vmatmul.mubr.f32.gmra.mrb[0].mxu0 %v69
    %v142 = vpop.f32.mrb[0].mxu0
    %v143 = vadd.f32 %v63, %v142
    %v144 = vpop.f32.mrb[0].mxu0
    %145 = vdwg.mxu0
    %v146 = vmul.f32 %v138, 0.01
    %v147 = vmul.f32 %v143, 0.01
    %v148 = vmax.f32 %v138, %v146
    %v149 = vmax.f32 %v143, %v147
    %v150 = vld [vmem:[#allocation4 + $0x20] sm:$0xff]
    %v151 = vld [vmem:[#allocation4 + $0x28] sm:$0xff]
    %v152 = vld [vmem:[#allocation4 + $0x30] sm:$0xff]
    %v153 = vld [vmem:[#allocation4 + $0x38] sm:$0xff]
    %v154 = vld [vmem:[#allocation4 + $0x40] sm:$0xff]
    %v155 = vld [vmem:[#allocation4 + $0x48] sm:$0xff]
    %v156 = vld [vmem:[#allocation4 + $0x50] sm:$0xff]
    %v157 = vld [vmem:[#allocation4 + $0x58] sm:$0xff]
    %v158 = vld [vmem:[#allocation4 + $0x60] sm:$0xff]
    %v159 = vld [vmem:[#allocation4 + $0x68] sm:$0xff]
    %v160 = vld [vmem:[#allocation4 + $0x70] sm:$0xff]
    %v161 = vld [vmem:[#allocation4 + $0x78] sm:$0xff]
    %v162 = vld [vmem:[#allocation4 + $0x80] sm:$0xff]
    %v163 = vld [vmem:[#allocation4 + $0x88] sm:$0xff]
    %v164 = vld [vmem:[#allocation4 + $0x90] sm:$0xff]
    %v165 = vld [vmem:[#allocation4 + $0x98] sm:$0xff]
    %v166 = vld [vmem:[#allocation6 + $0x1] sm:$0x1]
    %v167 = vlaneseq
    %v168 = vshrl.u32 %v167, 7
    %v169 = vsub.s32 0, %v168
    %v170 = vrot.slane %v166, %v169
    %171 = vmatprep.subr.mxu0 0.0
    %172 = vmatpush1.msra.mxu0 %v150
    %173 = vmatprep.subr.mxu0 0.0
    %174 = vmatpush1.msra.mxu0 %v151
    %175 = vmatprep.subr.mxu0 0.0
    %176 = vmatpush1.msra.mxu0 %v152
    %177 = vmatprep.subr.mxu0 0.0
    %178 = vmatpush1.msra.mxu0 %v153
    %179 = vmatprep.subr.mxu0 0.0
    %180 = vmatpush1.msra.mxu0 %v154
    %181 = vmatprep.subr.mxu0 0.0
    %182 = vmatpush1.msra.mxu0 %v155
    %183 = vmatprep.subr.mxu0 0.0
    %184 = vmatpush1.msra.mxu0 %v156
    %185 = vmatprep.subr.mxu0 0.0
    %186 = vmatpush1.msra.mxu0 %v157
    %187 = vmatprep.subr.mxu0 0.0
    %188 = vmatpush1.msra.mxu0 %v158
    %189 = vmatprep.subr.mxu0 0.0
    %190 = vmatpush1.msra.mxu0 %v159
    %191 = vmatprep.subr.mxu0 0.0
    %192 = vmatpush1.msra.mxu0 %v160
    %193 = vmatprep.subr.mxu0 0.0
    %194 = vmatpush1.msra.mxu0 %v161
    %195 = vmatprep.subr.mxu0 0.0
    %196 = vmatpush1.msra.mxu0 %v162
    %197 = vmatprep.subr.mxu0 0.0
    %198 = vmatpush1.msra.mxu0 %v163
    %199 = vmatprep.subr.mxu0 0.0
    %200 = vmatpush1.msra.mxu0 %v164
    %201 = vmatprep.subr.mxu0 0.0
    %202 = vmatpush1.msra.mxu0 %v165
    %203 = vmatprep.subr.mxu0 0.0
    %204 = vmatpush1.msra.mxu0 0.0
    %205 = vmatprep.subr.mxu0 0.0
    %206 = vmatpush1.msra.mxu0 0.0
    %207 = vmatprep.subr.mxu0 0.0
    %208 = vmatpush1.msra.mxu0 0.0
    %209 = vmatprep.subr.mxu0 0.0
    %210 = vmatpush1.msra.mxu0 0.0
    %211 = vmatprep.subr.mxu0 0.0
    %212 = vmatpush1.msra.mxu0 0.0
    %213 = vmatprep.subr.mxu0 0.0
    %214 = vmatpush1.msra.mxu0 0.0
    %215 = vmatprep.subr.mxu0 0.0
    %216 = vmatpush1.msra.mxu0 0.0
    %217 = vmatprep.subr.mxu0 0.0
    %218 = vmatpush1.msra.mxu0 0.0
    %219 = vmatprep.subr.mxu0 0.0
    %220 = vmatpush1.msra.mxu0 0.0
    %221 = vmatprep.subr.mxu0 0.0
    %222 = vmatpush1.msra.mxu0 0.0
    %223 = vmatprep.subr.mxu0 0.0
    %224 = vmatpush1.msra.mxu0 0.0
    %225 = vmatprep.subr.mxu0 0.0
    %226 = vmatpush1.msra.mxu0 0.0
    %227 = vmatprep.subr.mxu0 0.0
    %228 = vmatpush1.msra.mxu0 0.0
    %229 = vmatprep.subr.mxu0 0.0
    %230 = vmatpush1.msra.mxu0 0.0
    %231 = vmatprep.subr.mxu0 0.0
    %232 = vmatpush1.msra.mxu0 0.0
    %233 = vmatprep.subr.mxu0 0.0
    %234 = vmatpush1.msra.mxu0 0.0
    %235 = vmatprep.mubr.f32.mxu0 0.0
    %236 = vmatmul.mubr.f32.gmra.mrb[0].mxu0 %v148
    %v237 = vpop.f32.mrb[0].mxu0
    %v238 = vadd.f32 %v170, %v237
    %v239 = vpop.f32.mrb[0].mxu0
    %240 = vmatprep.mubr.f32.mxu0 0.0
    %241 = vmatmul.mubr.f32.gmra.mrb[0].mxu0 %v149
    %v242 = vpop.f32.mrb[0].mxu0
    %v243 = vadd.f32 %v170, %v242
    %v244 = vpop.f32.mrb[0].mxu0
    %245 = vdwg.mxu0
    %v246 = vmul.f32 %v238, 0.01
    %v247 = vmul.f32 %v243, 0.01
    %v248 = vmax.f32 %v238, %v246
    %v249 = vmax.f32 %v243, %v247
    %v250 = vld [vmem:[#allocation4 + $0xa0] sm:$0xff]
    %v251 = vld [vmem:[#allocation4 + $0xa8] sm:$0xff]
    %v252 = vld [vmem:[#allocation4 + $0xb0] sm:$0xff]
    %v253 = vld [vmem:[#allocation4 + $0xb8] sm:$0xff]
    %v254 = vld [vmem:[#allocation4 + $0xc0] sm:$0xff]
    %v255 = vld [vmem:[#allocation4 + $0xc8] sm:$0xff]
    %v256 = vld [vmem:[#allocation4 + $0xd0] sm:$0xff]
    %v257 = vld [vmem:[#allocation4 + $0xd8] sm:$0xff]
    %v258 = vld [vmem:[#allocation4 + $0xe0] sm:$0xff]
    %v259 = vld [vmem:[#allocation4 + $0xe8] sm:$0xff]
    %v260 = vld [vmem:[#allocation4 + $0xf0] sm:$0xff]
    %v261 = vld [vmem:[#allocation4 + $0xf8] sm:$0xff]
    %v262 = vld [vmem:[#allocation4 + $0x100] sm:$0xff]
    %v263 = vld [vmem:[#allocation4 + $0x108] sm:$0xff]
    %v264 = vld [vmem:[#allocation4 + $0x110] sm:$0xff]
    %v265 = vld [vmem:[#allocation4 + $0x118] sm:$0xff]
    %v266 = vld [vmem:[#allocation6 + $0x2] sm:$0x1]
    %v267 = vlaneseq
    %v268 = vshrl.u32 %v267, 7
    %v269 = vsub.s32 0, %v268
    %v270 = vrot.slane %v266, %v269
    %271 = vmatprep.subr.mxu0 0.0
    %272 = vmatpush1.msra.mxu0 %v250
    %273 = vmatprep.subr.mxu0 0.0
    %274 = vmatpush1.msra.mxu0 %v251
    %275 = vmatprep.subr.mxu0 0.0
    %276 = vmatpush1.msra.mxu0 %v252
    %277 = vmatprep.subr.mxu0 0.0
    %278 = vmatpush1.msra.mxu0 %v253
    %279 = vmatprep.subr.mxu0 0.0
    %280 = vmatpush1.msra.mxu0 %v254
    %281 = vmatprep.subr.mxu0 0.0
    %282 = vmatpush1.msra.mxu0 %v255
    %283 = vmatprep.subr.mxu0 0.0
    %284 = vmatpush1.msra.mxu0 %v256
    %285 = vmatprep.subr.mxu0 0.0
    %286 = vmatpush1.msra.mxu0 %v257
    %287 = vmatprep.subr.mxu0 0.0
    %288 = vmatpush1.msra.mxu0 %v258
    %289 = vmatprep.subr.mxu0 0.0
    %290 = vmatpush1.msra.mxu0 %v259
    %291 = vmatprep.subr.mxu0 0.0
    %292 = vmatpush1.msra.mxu0 %v260
    %293 = vmatprep.subr.mxu0 0.0
    %294 = vmatpush1.msra.mxu0 %v261
    %295 = vmatprep.subr.mxu0 0.0
    %296 = vmatpush1.msra.mxu0 %v262
    %297 = vmatprep.subr.mxu0 0.0
    %298 = vmatpush1.msra.mxu0 %v263
    %299 = vmatprep.subr.mxu0 0.0
    %300 = vmatpush1.msra.mxu0 %v264
    %301 = vmatprep.subr.mxu0 0.0
    %302 = vmatpush1.msra.mxu0 %v265
    %303 = vmatprep.subr.mxu0 0.0
    %304 = vmatpush1.msra.mxu0 0.0
    %305 = vmatprep.subr.mxu0 0.0
    %306 = vmatpush1.msra.mxu0 0.0
    %307 = vmatprep.subr.mxu0 0.0
    %308 = vmatpush1.msra.mxu0 0.0
    %309 = vmatprep.subr.mxu0 0.0
    %310 = vmatpush1.msra.mxu0 0.0
    %311 = vmatprep.subr.mxu0 0.0
    %312 = vmatpush1.msra.mxu0 0.0
    %313 = vmatprep.subr.mxu0 0.0
    %314 = vmatpush1.msra.mxu0 0.0
    %315 = vmatprep.subr.mxu0 0.0
    %316 = vmatpush1.msra.mxu0 0.0
    %317 = vmatprep.subr.mxu0 0.0
    %318 = vmatpush1.msra.mxu0 0.0
    %319 = vmatprep.subr.mxu0 0.0
    %320 = vmatpush1.msra.mxu0 0.0
    %321 = vmatprep.subr.mxu0 0.0
    %322 = vmatpush1.msra.mxu0 0.0
    %323 = vmatprep.subr.mxu0 0.0
    %324 = vmatpush1.msra.mxu0 0.0
    %325 = vmatprep.subr.mxu0 0.0
    %326 = vmatpush1.msra.mxu0 0.0
    %327 = vmatprep.subr.mxu0 0.0
    %328 = vmatpush1.msra.mxu0 0.0
    %329 = vmatprep.subr.mxu0 0.0
    %330 = vmatpush1.msra.mxu0 0.0
    %331 = vmatprep.subr.mxu0 0.0
    %332 = vmatpush1.msra.mxu0 0.0
    %333 = vmatprep.subr.mxu0 0.0
    %334 = vmatpush1.msra.mxu0 0.0
    %335 = vmatprep.mubr.f32.mxu0 0.0
    %336 = vmatmul.mubr.f32.gmra.mrb[0].mxu0 %v248
    %v337 = vpop.f32.mrb[0].mxu0
    %v338 = vadd.f32 %v270, %v337
    %v339 = vpop.f32.mrb[0].mxu0
    %340 = vmatprep.mubr.f32.mxu0 0.0
    %341 = vmatmul.mubr.f32.gmra.mrb[0].mxu0 %v249
    %v342 = vpop.f32.mrb[0].mxu0
    %v343 = vadd.f32 %v270, %v342
    %v344 = vpop.f32.mrb[0].mxu0
    %345 = vdwg.mxu0
    %346 = vst [vmem:[%s3] sm:$0xff] %v338
    %347 = vst [vmem:[%s3 + $0x8] sm:$0xff] %v343
    // Predicated region
    $region26: #{pose_vae_decoder.1} parent=1 // pred_check
      _
    $region27: #{pose_vae_decoder.1} parent=1 // pred_check_branch
      %349 = sbr.rel (0) target = $region29
    $region28: #{pose_vae_decoder.1} parent=1 // pred_region
      _
    $region29: #{pose_vae_decoder.1} parent=1 // pred_fallthru
      _
    // Predicated region
    $region30: #{pose_vae_decoder.1} parent=1 // pred_check
      _
    $region31: #{pose_vae_decoder.1} parent=1 // pred_check_branch
      %351 = sbr.rel (0) target = $region33
    $region32: #{pose_vae_decoder.1} parent=1 // pred_region
      _
    $region33: #{pose_vae_decoder.1} parent=1 // pred_fallthru
      _
    %352 = vsyncpa [#allocation3], 1
    %353 = vsyncpa [#allocation5], 1

</llo_original>
